<compile_context>
chip_gen: v7x
topology: tpu7x:2x2x1
jax: 0.10.0
libtpu: 0.0.40
codegen_flags: <defaults>
</compile_context>

<pallas_src>
import numpy as np
import jax
import jax.numpy as jnp
from jax.experimental import pallas as pl
from jax.experimental.pallas import tpu as pltpu

_LANES = 128  # one 128-lane row = two flattened 8x8 blocks


def _make_c_table() -> np.ndarray:
    """Standard JPEG chrominance quantization table (as in DiffJPEG)."""
    c_table = np.empty((8, 8), dtype=np.float32)
    c_table.fill(99.0)
    c_table[:4, :4] = np.array(
        [[17, 18, 24, 47],
         [18, 21, 26, 66],
         [24, 26, 56, 99],
         [47, 66, 99, 99]], dtype=np.float32).T
    return c_table


def _c_quantize_kernel(img_ref, table_ref, out_ref):
    # img_ref:   (br, 128) tile in VMEM, native input dtype (cast in-kernel)
    # table_ref: (1, 128)  f32 scaled quant-table row (broadcasts over sublanes)
    # torch.round == round half to even == jnp.round
    x = img_ref[...].astype(jnp.float32)
    out_ref[...] = jnp.round(x / table_ref[...])


def c_quantize(image: jax.Array, c_table: jax.Array, factor=1.0,
               block_rows: int = 4096) -> jax.Array:
    """Pallas implementation of c_quantize.forward.

    image:   (B, N, 8, 8) any float dtype (DCT blocks)
    c_table: (8, 8) float
    factor:  Python float or traced 0-d scalar
    returns: (B, N, 8, 8) float32
    """
    B, N, H, W = image.shape
    assert (H, W) == (8, 8) and c_table.shape == (8, 8)
    total = B * N * 64

    # ---- lane-dense reshape: (B, N, 8, 8) -> (rows, 128), contiguous/free ----
    flat = image.reshape(-1)
    rows = pl.cdiv(total, _LANES)
    lane_padded = rows * _LANES != total          # only when B*N is odd
    if lane_padded:
        flat = jnp.pad(flat, (0, rows * _LANES - total))
    x2d = flat.reshape(rows, _LANES)

    # ---- tile rows; let Pallas mask the partial last block (no row padding) ----
    if block_rows >= rows:
        br = rows                                  # single full-extent block
    else:
        br = max(8, (block_rows // 8) * 8)         # sublane-aligned tile
        br = min(br, rows)
    grid_rows = pl.cdiv(rows, br)

    # ---- scaled quant-table row: two flattened 8x8 blocks per 128 lanes ----
    # factor may be traced; the multiply is a single 128-element wrapper op.
    table_row = jnp.tile(
        (c_table.astype(jnp.float32) * jnp.asarray(factor, jnp.float32)
         ).reshape(-1), 2
    ).reshape(1, _LANES)

    out2d = pl.pallas_call(
        _c_quantize_kernel,
        out_shape=jax.ShapeDtypeStruct((rows, _LANES), jnp.float32),
        grid_spec=pltpu.PrefetchScalarGridSpec(
            num_scalar_prefetch=0,
            grid=(grid_rows,),
            in_specs=[
                pl.BlockSpec((br, _LANES), lambda i: (i, 0)),
                pl.BlockSpec((1, _LANES), lambda i: (0, 0)),
            ],
            out_specs=pl.BlockSpec((br, _LANES), lambda i: (i, 0)),
        ),
        compiler_params=pltpu.CompilerParams(
            dimension_semantics=("parallel",)),
    )(x2d, table_row)

    if lane_padded:
        return out2d.reshape(-1)[:total].reshape(B, N, 8, 8)
    return out2d.reshape(B, N, 8, 8)


if __name__ == "__main__":
    key = jax.random.PRNGKey(0)
    c_tab = jnp.asarray(_make_c_table())
    k1, k2, k3 = jax.random.split(key, 3)

    # (a) Small aligned case: 2 images x 16 blocks -> 16 rows, single tile.
    img_a = jax.random.normal(k1, (2, 16, 8, 8), dtype=jnp.float32) * 100.0
    out_a = jax.block_until_ready(c_quantize(img_a, c_tab, factor=1.0))
    ref_a = jnp.round(img_a / (c_tab * jnp.float32(1.0)))
    np.testing.assert_array_equal(np.asarray(out_a), np.asarray(ref_a))

    # (b) Multi-tile ragged grid: 600 rows with 64-row tiles -> 10 grid steps,
    #     partial (masked) last block, traced-style factor != 1.
    img_b = jax.random.normal(k2, (2, 600, 8, 8), dtype=jnp.float32) * 100.0
    out_b = jax.block_until_ready(
        c_quantize(img_b, c_tab, factor=2.0, block_rows=64))
    ref_b = jnp.round(img_b / (c_tab * jnp.float32(2.0)))
    np.testing.assert_array_equal(np.asarray(out_b), np.asarray(ref_b))

    # (c) Odd B*N (lane-tail pad path) with bf16 input (in-kernel f32 cast).
    img_c = (jax.random.normal(k3, (1, 3, 8, 8), dtype=jnp.float32)
             * 100.0).astype(jnp.bfloat16)
    out_c = jax.block_until_ready(c_quantize(img_c, c_tab, factor=1.0))
    ref_c = jnp.round(img_c.astype(jnp.float32) / (c_tab * jnp.float32(1.0)))
    np.testing.assert_array_equal(np.asarray(out_c), np.asarray(ref_c))

    print("KERNEL_OK")
</pallas_src>

<mosaic_0001>
module attributes {stable_mosaic.version = 11 : i64} {
  func.func @_c_quantize_kernel(%arg0: i32, %arg1: memref<16x128xf32, #tpu.memory_space<vmem>>, %arg2: memref<1x128xf32, #tpu.memory_space<vmem>>, %arg3: memref<16x128xf32, #tpu.memory_space<vmem>>) attributes {dimension_semantics = [#tpu.dimension_semantics<parallel>], iteration_bounds = array<i64: 1>, scalar_prefetch = 0 : i64, scratch_operands = 0 : i64, tpu.core_type = #tpu.core_type<tc>, window_params = [{transform_indices = @transform_0, window_bounds = array<i64: 16, 128>}, {pipeline_mode = #tpu.pipeline_mode<synchronous>, transform_indices = @transform_1, window_bounds = array<i64: 1, 128>}, {transform_indices = @transform_2, window_bounds = array<i64: 16, 128>}]} {
    %c0 = arith.constant 0 : index
    %c0_0 = arith.constant 0 : index
    %0 = vector.load %arg1[%c0, %c0_0] : memref<16x128xf32, #tpu.memory_space<vmem>>, vector<16x128xf32>
    %c0_1 = arith.constant 0 : index
    %c0_2 = arith.constant 0 : index
    %1 = vector.load %arg2[%c0_1, %c0_2] : memref<1x128xf32, #tpu.memory_space<vmem>>, vector<1x128xf32>
    %2 = vector.broadcast %1 : vector<1x128xf32> to vector<16x128xf32>
    %3 = arith.divf %0, %2 : vector<16x128xf32>
    %4 = math.roundeven %3 : vector<16x128xf32>
    %c0_3 = arith.constant 0 : index
    %c0_4 = arith.constant 0 : index
    %5 = vector.load %arg3[%c0_3, %c0_4] : memref<16x128xf32, #tpu.memory_space<vmem>>, vector<16x128xf32>
    tpu.vector_store %arg3[%c0_3, %c0_4], %4 {strides = array<i32>} : memref<16x128xf32, #tpu.memory_space<vmem>>, vector<16x128xf32>,
    return
  }
  func.func @transform_0(%arg0: i32) -> (i32, i32) {
    %c0_i32 = arith.constant 0 : i32
    %c0_i32_0 = arith.constant 0 : i32
    return %arg0, %c0_i32 : i32, i32
  }
  func.func @transform_1(%arg0: i32) -> (i32, i32) {
    %c0_i32 = arith.constant 0 : i32
    %c0_i32_0 = arith.constant 0 : i32
    %c0_i32_1 = arith.constant 0 : i32
    return %c0_i32, %c0_i32_0 : i32, i32
  }
  func.func @transform_2(%arg0: i32) -> (i32, i32) {
    %c0_i32 = arith.constant 0 : i32
    %c0_i32_0 = arith.constant 0 : i32
    return %arg0, %c0_i32 : i32, i32
  }
}

</mosaic_0001>

<llo_original>
// kernel: tpu_custom_call.1
$region0: #{tpu_custom_call.1}
  #allocation0 [shape = 'u32[]', space=smem, size = 0x4, offset = 0x4, fixed_abs, tag = 'smem constant byte address 0x4 - core index']
  #allocation1 [shape = 'u32[144,128]{1,0:T(1,128)}', space=vmem, size = 0x12000, scoped, tag = 'internal scratch']
  %s0 = inlined_call_operand.hbm [shape: f32[16,128], index: 0, kind: input, shape index: {}]
  %s1 = inlined_call_operand.vmem [shape: f32[1,128], index: 1, kind: input, shape index: {}]
  %s2 = inlined_call_operand.hbm [shape: f32[16,128], index: 2, kind: output, shape index: {}]
  %s3 = sld [smem:[#allocation0]]
  $region22: #{tpu_custom_call.1} parent=0
    _
  %s5 = ssub.s32 1, %s3
  %s6 = scalar_select 0, %s5, %s3
  $region1: #{tpu_custom_call.1} parent=0
    #allocation2 [shape = 'u8[8192]{0}', space=vmem, size = 0x2000, scoped, tag = 'input window, operand 0, single buffered']
    #allocation3 [shape = 's32[1]{0}', space=sflag, size = 0x4, scoped, tag = 'scoped memory for tpu_custom_call.1']
    #allocation4 [shape = 's32[1]{0}', space=sflag, size = 0x4, scoped, tag = 'scoped memory for tpu_custom_call.1']
    #allocation5 [shape = 'u8[8192]{0}', space=vmem, size = 0x2000, scoped, tag = 'output window, operand 0, single buffered']
    %7 = vsyncpa [#allocation3], 0
    %8 = vsyncpa [#allocation4], 0
    // Predicated region
    $region2: #{tpu_custom_call.1} parent=1 // pred_check
      _
    $region3: #{tpu_custom_call.1} parent=1 // pred_check_branch
      %10 = sbr.rel (0) target = $region5
    $region4: #{tpu_custom_call.1} parent=1 // pred_region
      %s12 = ssub.s32 256, 256
      %13 = vsyncadd [#allocation3], %s12
      %s14 = sshll.u32 [#allocation2], 4
      %s15 = int_to_ptr.vmem [resolvable:$true] %s14
      %20 = dma.hbm_to_vmem [thread:$0]  %s0, 256, %s15, [#allocation3], 128, 128, 8
    $region5: #{tpu_custom_call.1} parent=1 // pred_fallthru
      _
    // Predicated region
    $region6: #{tpu_custom_call.1} parent=1 // pred_check
      _
    $region7: #{tpu_custom_call.1} parent=1 // pred_check_branch
      %22 = sbr.rel (0) target = $region9
    $region8: #{tpu_custom_call.1} parent=1 // pred_region
      _
    $region9: #{tpu_custom_call.1} parent=1 // pred_fallthru
      _
    // Predicated region
    $region10: #{tpu_custom_call.1} parent=1 // pred_check
      _
    $region11: #{tpu_custom_call.1} parent=1 // pred_check_branch
      %24 = sbr.rel (0) target = $region13
    $region12: #{tpu_custom_call.1} parent=1 // pred_region
      %25 = dma.done [#allocation3], 256
    $region13: #{tpu_custom_call.1} parent=1 // pred_fallthru
      _
    %v26 = vld [vmem:[#allocation2] sm:$0xff]
    %v27 = vld [vmem:[#allocation2 + $0x8] sm:$0xff]
    %v28 = vld [vmem:[%s1] sm:$0x1]
    %v30 = vlaneseq
    %v31 = vshrl.u32 %v30, 7
    %v32 = vsub.s32 0, %v31
    %v33 = vrot.slane %v28, %v32
    %v35 = vrcp.pop %v33
    %v36 = vmul.f32 %v26, %v35
    %v37 = vmul.f32 %v27, %v35
    %v38 = vround.ne.pseudo %v36
    %v39 = vround.ne.pseudo %v37
    %40 = vst [vmem:[#allocation5] sm:$0xff] %v38
    %41 = vst [vmem:[#allocation5 + $0x8] sm:$0xff] %v39
    // Predicated region
    $region14: #{tpu_custom_call.1} parent=1 // pred_check
      _
    $region15: #{tpu_custom_call.1} parent=1 // pred_check_branch
      %43 = sbr.rel (0) target = $region17
    $region16: #{tpu_custom_call.1} parent=1 // pred_region
      %s45 = ssub.s32 256, 256
      %46 = vsyncadd [#allocation4], %s45
      %s47 = sshll.u32 [#allocation5], 4
      %s48 = int_to_ptr.vmem [resolvable:$true] %s47
      %53 = dma.vmem_to_hbm [thread:$0]  %s48, 256, %s2, [#allocation4], 128, 128, 8
    $region17: #{tpu_custom_call.1} parent=1 // pred_fallthru
      _
    // Predicated region
    $region18: #{tpu_custom_call.1} parent=1 // pred_check
      _
    $region19: #{tpu_custom_call.1} parent=1 // pred_check_branch
      %55 = sbr.rel (0) target = $region21
    $region20: #{tpu_custom_call.1} parent=1 // pred_region
      %56 = dma.done [#allocation4], 256
    $region21: #{tpu_custom_call.1} parent=1 // pred_fallthru
      _
    %57 = vsyncpa [#allocation3], 1
    %58 = vsyncpa [#allocation4], 1

</llo_original>
